<compile_context>
chip_gen: v7x
topology: tpu7x:2x2x1
jax: 0.10.0
libtpu: 0.0.40
codegen_flags: <defaults>
</compile_context>

<pallas_src>
import functools

import jax
import jax.numpy as jnp
import numpy as np
from jax.experimental import pallas as pl
from jax.experimental.pallas import tpu as pltpu

LANE = 128     # TPU lane width
SUBLANE = 8    # f32 sublane count


def _round_up(x, m):
    return (x + m - 1) // m * m


# ---------------------------------------------------------------------------
# Kernel 1: full bit-plane weight reconstruction (off the per-forward hot path)
#   wt[d, o] = (sum_i bits[i, d, o] * int_base[i]) * step_size     ->  (D, O_pad) = w.T
# ---------------------------------------------------------------------------
def _make_reconstruct_kernel(int_base, step_size):
    n_bits = len(int_base)

    def kernel(bits_ref, wt_ref):
        # bits_ref: (nb, D, To) int8 VMEM (bit planes, MSB first)
        # wt_ref:   (D, To)     f32  VMEM (transposed, matmul-ready weights)
        # int32 accumulation: one convert + one scalar f32 mul at the end instead
        # of n_bits int8->f32 converts and n_bits f32 vmuls.
        acc = bits_ref[0].astype(jnp.int32) * int_base[0]
        for i in range(1, n_bits):                 # static unrolled loop over planes
            acc = acc + bits_ref[i].astype(jnp.int32) * int_base[i]
        wt_ref[...] = acc.astype(jnp.float32) * step_size

    return kernel


def reconstruct_linear_weights(bits_i8, int_base, step_size, *, to=LANE):
    # bits_i8: (nb, D, O_pad) int8 ; int_base: python ints (MSB negated) ; step: float
    nb, D, O_pad = bits_i8.shape
    assert O_pad % to == 0
    kernel = _make_reconstruct_kernel(tuple(int(b) for b in int_base), float(step_size))
    # Lane-axis grid keeps the per-step footprint bounded for large real heads.
    # TODO(synk): also tile D for very large feature dims (e.g. vgg16_bn 4096).
    return pl.pallas_call(
        kernel,
        out_shape=jax.ShapeDtypeStruct((D, O_pad), jnp.float32),
        grid=(O_pad // to,),
        in_specs=[pl.BlockSpec((nb, D, to), lambda j: (0, 0, j))],
        out_specs=pl.BlockSpec((D, to), lambda j: (0, j)),
        compiler_params=pltpu.CompilerParams(dimension_semantics=("parallel",)),
    )(bits_i8)


# ---------------------------------------------------------------------------
# Kernel 1b: incremental bit-flip update (attack inner loop)
#   One flip of w_twos[o, d, bit] changes wt[d, o] by +-(base[bit]*step_size);
#   patch only the 8-row slab containing row d, in place (aliased output).
# ---------------------------------------------------------------------------
def _flip_update_kernel(flip_ref, base_ref, blk_in_ref, blk_out_ref):
    # flip_ref: (4,) int32 SMEM scalar-prefetch  [d, o, bit_idx, sign (+1/-1)]
    # base_ref: (nb,) f32 SMEM                    base * step_size (MSB negated)
    # blk refs: (SUBLANE, O_pad) f32 VMEM         slab of wt containing row d
    r = flip_ref[0] % SUBLANE
    o = flip_ref[1]
    delta = base_ref[flip_ref[2]] * flip_ref[3].astype(jnp.float32)
    blk = blk_in_ref[...]
    row_ids = jax.lax.broadcasted_iota(jnp.int32, blk.shape, 0)
    lane_ids = jax.lax.broadcasted_iota(jnp.int32, blk.shape, 1)
    blk_out_ref[...] = blk + jnp.where((row_ids == r) & (lane_ids == o), delta, 0.0)


@functools.partial(jax.jit, donate_argnums=(0,))
def apply_bit_flip(wt, flip, base_scaled):
    # wt: (D, O_pad) f32 (donated -> updated in place); flip: (4,) int32
    D, O_pad = wt.shape
    grid_spec = pltpu.PrefetchScalarGridSpec(
        num_scalar_prefetch=1,
        grid=(1,),
        in_specs=[
            pl.BlockSpec(memory_space=pltpu.MemorySpace.SMEM),              # base*step
            pl.BlockSpec((SUBLANE, O_pad), lambda g, flip: (flip[0] // SUBLANE, 0)),
        ],
        out_specs=pl.BlockSpec((SUBLANE, O_pad),
                               lambda g, flip: (flip[0] // SUBLANE, 0)),
    )
    return pl.pallas_call(
        _flip_update_kernel,
        out_shape=jax.ShapeDtypeStruct((D, O_pad), jnp.float32),
        grid_spec=grid_spec,
        input_output_aliases={2: 0},   # wt (flat input idx 2, after flip & base) -> out 0
    )(flip, base_scaled, wt)


# ---------------------------------------------------------------------------
# Kernel 2: linear head  y = x @ w.T + b   on lane-dense padded tiles
# ---------------------------------------------------------------------------
def _linear_kernel(x_ref, wt_ref, b_ref, o_ref):
    # x_ref: (tb, D), wt_ref: (D, O_pad), b_ref: (1, O_pad), o_ref: (tb, O_pad)
    o_ref[...] = (
        jnp.dot(x_ref[...], wt_ref[...], preferred_element_type=jnp.float32)
        + b_ref[...]
    )


def bit_linear_forward_pallas(x_feat, wt, bias_pad):
    # x_feat: (B, D) f32 ; wt: (D, O_pad) f32 ; bias_pad: (1, O_pad) f32
    B, D = x_feat.shape
    O_pad = wt.shape[1]
    # Batch tile: 128 rows when available (full-depth MXU pass, amortizes the
    # ~0.35us per-grid-step overhead 16x vs tb=8); small batches use one
    # sublane-aligned tile.
    tb = LANE if B >= LANE else _round_up(max(B, SUBLANE), SUBLANE)
    B_pad = _round_up(B, tb)
    if B_pad != B:
        x_feat = jnp.pad(x_feat, ((0, B_pad - B), (0, 0)))

    cost = pl.CostEstimate(
        flops=2 * B_pad * D * O_pad,
        transcendentals=0,
        bytes_accessed=4 * (B_pad * D + D * O_pad + O_pad + B_pad * O_pad),
    )
    out = pl.pallas_call(
        _linear_kernel,
        out_shape=jax.ShapeDtypeStruct((B_pad, O_pad), jnp.float32),
        grid=(B_pad // tb,),
        in_specs=[
            pl.BlockSpec((tb, D), lambda i: (i, 0)),          # x tile (batch rows)
            # Grid-invariant operands: single-buffered. Halves the resident VMEM
            # for real heads (D=512..4096) -- matters vs v5e's 16 MiB scoped
            # default and v7x's 64 MiB physical VMEM.
            pl.BlockSpec((D, O_pad), lambda i: (0, 0),
                         pipeline_mode=pl.Buffered(1)),       # w.T (resident)
            pl.BlockSpec((1, O_pad), lambda i: (0, 0),
                         pipeline_mode=pl.Buffered(1)),       # bias (resident)
        ],
        out_specs=pl.BlockSpec((tb, O_pad), lambda i: (i, 0)),
        compiler_params=pltpu.CompilerParams(
            # Only shards across TensorCores (v7x) when B_pad // tb >= 2,
            # i.e. a real candidate batch; harmless (no-op) for a single step.
            dimension_semantics=("parallel",)),
        cost_estimate=cost,
    )(x_feat, wt, bias_pad)
    return out[:B]


def bit_linear_forward_xla(x_feat, wt, bias_pad):
    # Tiny-batch path: fuse into the surrounding XLA program (no pallas_call
    # dispatch, no extra HBM round-trip of the features). f32 precision to match
    # module semantics.
    return jnp.dot(x_feat, wt, precision=jax.lax.Precision.HIGHEST) + bias_pad


# ---------------------------------------------------------------------------
# Synthetic stand-in for `self.model(x)` (external backbone producing features)
# TODO(synk): the real backbone (resnet20 / vgg16_bn feature extractor) is an
#             external module; replaced here by conv3x3 + ReLU + global avg pool.
# ---------------------------------------------------------------------------
def backbone_features(x_nhwc, conv_w):
    y = jax.lax.conv_general_dilated(
        x_nhwc, conv_w,
        window_strides=(1, 1), padding="SAME",
        dimension_numbers=("NHWC", "HWIO", "NHWC"),
    )
    y = jnp.maximum(y, 0.0)
    return jnp.mean(y, axis=(1, 2))  # (B, D)


def attacked_model_forward(x_nhwc, conv_w, wt, bias_pad, num_classes, *,
                           force_pallas=None):
    feats = backbone_features(x_nhwc, conv_w)                  # self.model(x)
    use_pallas = (feats.shape[0] >= LANE) if force_pallas is None else force_pallas
    if use_pallas:
        logits = bit_linear_forward_pallas(feats, wt, bias_pad)
    else:
        logits = bit_linear_forward_xla(feats, wt, bias_pad)
    # Padded class lanes hold 0 (not -inf): always slice before argmax/softmax.
    return logits[:, :num_classes]


# ---------------------------------------------------------------------------
# Deterministic parameter construction (mirrors __init__ / reset_w_twos)
# ---------------------------------------------------------------------------
def make_params(key, num_classes, feat_dim, n_bits, c_in):
    k1, k2, k3 = jax.random.split(key, 3)
    o_pad = _round_up(num_classes, LANE)

    # Integer quantized weights in [-2^(nb-1), 2^(nb-1)-1] (what self.w holds).
    w_int = np.asarray(
        jax.random.randint(k1, (num_classes, feat_dim),
                           -(2 ** (n_bits - 1)), 2 ** (n_bits - 1), dtype=jnp.int32))
    # reset_w_twos: two's-complement bit planes, MSB first -> (O, D, nb).
    u = np.mod(w_int, 2 ** n_bits)
    shifts = np.arange(n_bits - 1, -1, -1)
    w_twos = ((u[:, :, None] >> shifts[None, None, :]) & 1).astype(np.float32)

    # Kernel layout: (nb, D, O_pad) int8, classes padded to 128 lanes.
    bits_ndo = np.transpose(w_twos, (2, 1, 0)).astype(np.int8)       # (nb, D, O)
    bits_pad = np.zeros((n_bits, feat_dim, o_pad), dtype=np.int8)
    bits_pad[:, :, :num_classes] = bits_ndo

    # base = [2^(nb-1), ..., 1] with base[0] negated (two's complement sign bit).
    int_base = [2 ** i for i in range(n_bits - 1, -1, -1)]
    int_base[0] = -int_base[0]
    step_size = 0.0125  # linear.step_size of the quantized layer
    base_scaled = (np.asarray(int_base, np.float32) * np.float32(step_size))

    bias = np.asarray(jax.random.normal(k2, (num_classes,), jnp.float32)) * 0.1
    bias_pad = np.zeros((1, o_pad), dtype=np.float32)
    bias_pad[0, :num_classes] = bias

    conv_w = jax.random.normal(k3, (3, 3, c_in, feat_dim), jnp.float32) * 0.05

    return dict(
        bits=jnp.asarray(bits_pad), int_base=int_base,
        base_scaled=jnp.asarray(base_scaled), bias_pad=jnp.asarray(bias_pad),
        conv_w=conv_w, step_size=step_size,
        w_int=w_int, w_twos=w_twos, bias=bias)


if __name__ == "__main__":
    NUM_CLASSES, FEAT_DIM, N_BITS, C_IN = 10, 128, 8, 3

    key = jax.random.PRNGKey(0)
    kx, kb, kp = jax.random.split(key, 3)
    p = make_params(kp, NUM_CLASSES, FEAT_DIM, N_BITS, C_IN)

    # --- weight reconstruction: once per weight update, not per forward ------
    wt = reconstruct_linear_weights(p["bits"], p["int_base"], p["step_size"])
    wt = jax.block_until_ready(wt)
    np.testing.assert_allclose(
        np.asarray(wt)[:, :NUM_CLASSES].T,
        p["w_int"].astype(np.float32) * np.float32(p["step_size"]),
        rtol=1e-5, atol=1e-6)

    base_np = np.asarray(p["int_base"], dtype=np.float32)
    w_ref = (p["w_twos"] * base_np.reshape(1, 1, -1)).sum(-1) * p["step_size"]  # (O, D)

    def ref_logits(x_nhwc):
        feats = np.asarray(backbone_features(x_nhwc, p["conv_w"]), np.float64)
        return feats @ w_ref.T.astype(np.float64) + np.asarray(p["bias"], np.float64)

    fwd = jax.jit(attacked_model_forward, static_argnums=(4,),
                  static_argnames=("force_pallas",))

    # --- case 1: the module's spec shape, NCHW (2, 3, 16, 16) ----------------
    x_small_nchw = jax.random.normal(kx, (2, C_IN, 16, 16), jnp.float32)
    x_small = jnp.transpose(x_small_nchw, (0, 2, 3, 1))
    out_small = jax.block_until_ready(
        fwd(x_small, p["conv_w"], wt, p["bias_pad"], NUM_CLASSES))      # XLA-fused head
    np.testing.assert_allclose(np.asarray(out_small), ref_logits(x_small),
                               rtol=1e-4, atol=1e-4)
    out_small_pl = jax.block_until_ready(
        fwd(x_small, p["conv_w"], wt, p["bias_pad"], NUM_CLASSES,
            force_pallas=True))                                          # Pallas head
    np.testing.assert_allclose(np.asarray(out_small_pl), ref_logits(x_small),
                               rtol=1e-4, atol=1e-4)

    # --- case 2: batched attack candidates (B=256 -> tb=128, grid=(2,)) ------
    x_big_nchw = jax.random.normal(kb, (256, C_IN, 16, 16), jnp.float32)
    x_big = jnp.transpose(x_big_nchw, (0, 2, 3, 1))
    out_big = jax.block_until_ready(
        fwd(x_big, p["conv_w"], wt, p["bias_pad"], NUM_CLASSES))         # Pallas head
    np.testing.assert_allclose(np.asarray(out_big), ref_logits(x_big),
                               rtol=1e-4, atol=1e-4)

    # --- case 3: incremental in-place bit-flip updates (attack inner loop) ---
    w_twos_np = p["w_twos"].copy()
    flips = [(3, 17, 0), (7, 101, 4), (1, 63, 7)]     # (class o, feature d, bit i)
    for (o, d, i) in flips:
        old_bit = int(w_twos_np[o, d, i])
        sign = 1 - 2 * old_bit                        # 0->1: +1 ; 1->0: -1
        w_twos_np[o, d, i] = 1.0 - old_bit
        flip_arr = jnp.asarray([d, o, i, sign], dtype=jnp.int32)
        wt = apply_bit_flip(wt, flip_arr, p["base_scaled"])
    wt = jax.block_until_ready(wt)
    w_flip_ref = (w_twos_np * base_np.reshape(1, 1, -1)).sum(-1) * p["step_size"]
    np.testing.assert_allclose(np.asarray(wt)[:, :NUM_CLASSES].T, w_flip_ref,
                               rtol=1e-5, atol=1e-5)

    print("KERNEL_OK")
</pallas_src>

<mosaic_0001>
module attributes {stable_mosaic.version = 11 : i64} {
  func.func @kernel(%arg0: i32, %arg1: memref<8x128x128xi8, #tpu.memory_space<vmem>>, %arg2: memref<128x128xf32, #tpu.memory_space<vmem>>) attributes {dimension_semantics = [#tpu.dimension_semantics<parallel>], iteration_bounds = array<i64: 1>, scalar_prefetch = 0 : i64, scratch_operands = 0 : i64, tpu.core_type = #tpu.core_type<tc>, window_params = [{transform_indices = @transform_0, window_bounds = array<i64: 8, 128, 128>}, {transform_indices = @transform_1, window_bounds = array<i64: 128, 128>}]} {
    %c0 = arith.constant 0 : index
    %c0_0 = arith.constant 0 : index
    %c0_1 = arith.constant 0 : index
    %0 = vector.load %arg1[%c0, %c0_0, %c0_1] : memref<8x128x128xi8, #tpu.memory_space<vmem>>, vector<1x128x128xi8>
    %1 = vector.shape_cast %0 : vector<1x128x128xi8> to vector<128x128xi8>
    %2 = arith.extsi %1 : vector<128x128xi8> to vector<128x128xi32>
    %c-128_i32 = arith.constant -128 : i32
    %3 = vector.broadcast %c-128_i32 : i32 to vector<128x128xi32>
    %4 = arith.muli %2, %3 : vector<128x128xi32>
    %c1 = arith.constant 1 : index
    %c0_2 = arith.constant 0 : index
    %c0_3 = arith.constant 0 : index
    %5 = vector.load %arg1[%c1, %c0_2, %c0_3] : memref<8x128x128xi8, #tpu.memory_space<vmem>>, vector<1x128x128xi8>
    %6 = vector.shape_cast %5 : vector<1x128x128xi8> to vector<128x128xi8>
    %7 = arith.extsi %6 : vector<128x128xi8> to vector<128x128xi32>
    %c64_i32 = arith.constant 64 : i32
    %8 = vector.broadcast %c64_i32 : i32 to vector<128x128xi32>
    %9 = arith.muli %7, %8 : vector<128x128xi32>
    %10 = arith.addi %4, %9 : vector<128x128xi32>
    %c2 = arith.constant 2 : index
    %c0_4 = arith.constant 0 : index
    %c0_5 = arith.constant 0 : index
    %11 = vector.load %arg1[%c2, %c0_4, %c0_5] : memref<8x128x128xi8, #tpu.memory_space<vmem>>, vector<1x128x128xi8>
    %12 = vector.shape_cast %11 : vector<1x128x128xi8> to vector<128x128xi8>
    %13 = arith.extsi %12 : vector<128x128xi8> to vector<128x128xi32>
    %c32_i32 = arith.constant 32 : i32
    %14 = vector.broadcast %c32_i32 : i32 to vector<128x128xi32>
    %15 = arith.muli %13, %14 : vector<128x128xi32>
    %16 = arith.addi %10, %15 : vector<128x128xi32>
    %c3 = arith.constant 3 : index
    %c0_6 = arith.constant 0 : index
    %c0_7 = arith.constant 0 : index
    %17 = vector.load %arg1[%c3, %c0_6, %c0_7] : memref<8x128x128xi8, #tpu.memory_space<vmem>>, vector<1x128x128xi8>
    %18 = vector.shape_cast %17 : vector<1x128x128xi8> to vector<128x128xi8>
    %19 = arith.extsi %18 : vector<128x128xi8> to vector<128x128xi32>
    %c16_i32 = arith.constant 16 : i32
    %20 = vector.broadcast %c16_i32 : i32 to vector<128x128xi32>
    %21 = arith.muli %19, %20 : vector<128x128xi32>
    %22 = arith.addi %16, %21 : vector<128x128xi32>
    %c4 = arith.constant 4 : index
    %c0_8 = arith.constant 0 : index
    %c0_9 = arith.constant 0 : index
    %23 = vector.load %arg1[%c4, %c0_8, %c0_9] : memref<8x128x128xi8, #tpu.memory_space<vmem>>, vector<1x128x128xi8>
    %24 = vector.shape_cast %23 : vector<1x128x128xi8> to vector<128x128xi8>
    %25 = arith.extsi %24 : vector<128x128xi8> to vector<128x128xi32>
    %c8_i32 = arith.constant 8 : i32
    %26 = vector.broadcast %c8_i32 : i32 to vector<128x128xi32>
    %27 = arith.muli %25, %26 : vector<128x128xi32>
    %28 = arith.addi %22, %27 : vector<128x128xi32>
    %c5 = arith.constant 5 : index
    %c0_10 = arith.constant 0 : index
    %c0_11 = arith.constant 0 : index
    %29 = vector.load %arg1[%c5, %c0_10, %c0_11] : memref<8x128x128xi8, #tpu.memory_space<vmem>>, vector<1x128x128xi8>
    %30 = vector.shape_cast %29 : vector<1x128x128xi8> to vector<128x128xi8>
    %31 = arith.extsi %30 : vector<128x128xi8> to vector<128x128xi32>
    %c4_i32 = arith.constant 4 : i32
    %32 = vector.broadcast %c4_i32 : i32 to vector<128x128xi32>
    %33 = arith.muli %31, %32 : vector<128x128xi32>
    %34 = arith.addi %28, %33 : vector<128x128xi32>
    %c6 = arith.constant 6 : index
    %c0_12 = arith.constant 0 : index
    %c0_13 = arith.constant 0 : index
    %35 = vector.load %arg1[%c6, %c0_12, %c0_13] : memref<8x128x128xi8, #tpu.memory_space<vmem>>, vector<1x128x128xi8>
    %36 = vector.shape_cast %35 : vector<1x128x128xi8> to vector<128x128xi8>
    %37 = arith.extsi %36 : vector<128x128xi8> to vector<128x128xi32>
    %c2_i32 = arith.constant 2 : i32
    %38 = vector.broadcast %c2_i32 : i32 to vector<128x128xi32>
    %39 = arith.muli %37, %38 : vector<128x128xi32>
    %40 = arith.addi %34, %39 : vector<128x128xi32>
    %c7 = arith.constant 7 : index
    %c0_14 = arith.constant 0 : index
    %c0_15 = arith.constant 0 : index
    %41 = vector.load %arg1[%c7, %c0_14, %c0_15] : memref<8x128x128xi8, #tpu.memory_space<vmem>>, vector<1x128x128xi8>
    %42 = vector.shape_cast %41 : vector<1x128x128xi8> to vector<128x128xi8>
    %43 = arith.extsi %42 : vector<128x128xi8> to vector<128x128xi32>
    %c1_i32 = arith.constant 1 : i32
    %44 = vector.broadcast %c1_i32 : i32 to vector<128x128xi32>
    %45 = arith.muli %43, %44 : vector<128x128xi32>
    %46 = arith.addi %40, %45 : vector<128x128xi32>
    %47 = arith.sitofp %46 : vector<128x128xi32> to vector<128x128xf32>
    %cst = arith.constant 1.250000e-02 : f32
    %48 = vector.broadcast %cst : f32 to vector<128x128xf32>
    %49 = arith.mulf %47, %48 : vector<128x128xf32>
    %c0_16 = arith.constant 0 : index
    %c0_17 = arith.constant 0 : index
    %50 = vector.load %arg2[%c0_16, %c0_17] : memref<128x128xf32, #tpu.memory_space<vmem>>, vector<128x128xf32>
    tpu.vector_store %arg2[%c0_16, %c0_17], %49 {strides = array<i32>} : memref<128x128xf32, #tpu.memory_space<vmem>>, vector<128x128xf32>,
    return
  }
  func.func @transform_0(%arg0: i32) -> (i32, i32, i32) {
    %c0_i32 = arith.constant 0 : i32
    %c0_i32_0 = arith.constant 0 : i32
    %c0_i32_1 = arith.constant 0 : i32
    return %c0_i32, %c0_i32_0, %arg0 : i32, i32, i32
  }
  func.func @transform_1(%arg0: i32) -> (i32, i32) {
    %c0_i32 = arith.constant 0 : i32
    %c0_i32_0 = arith.constant 0 : i32
    return %c0_i32, %arg0 : i32, i32
  }
}

</mosaic_0001>

<llo_original>
// kernel: tpu_custom_call.1
$region0: #{tpu_custom_call.1}
  #allocation0 [shape = 'u32[]', space=smem, size = 0x4, offset = 0x4, fixed_abs, tag = 'smem constant byte address 0x4 - core index']
  #allocation1 [shape = 'u32[144,128]{1,0:T(1,128)}', space=vmem, size = 0x12000, scoped, tag = 'internal scratch']
  %s0 = inlined_call_operand.hbm [shape: s8[8,128,128], index: 0, kind: input, shape index: {}]
  %s1 = inlined_call_operand.hbm [shape: f32[128,128], index: 1, kind: output, shape index: {}]
  %s2 = sld [smem:[#allocation0]]
  $region18: #{tpu_custom_call.1} parent=0
    _
  %s4 = ssub.s32 1, %s2
  %s5 = scalar_select 0, %s4, %s2
  $region1: #{tpu_custom_call.1} parent=0
    #allocation2 [shape = 'u8[131072]{0}', space=vmem, size = 0x20000, scoped, tag = 'input window, operand 0, single buffered']
    #allocation3 [shape = 's32[1]{0}', space=sflag, size = 0x4, scoped, tag = 'scoped memory for tpu_custom_call.1']
    #allocation4 [shape = 's32[1]{0}', space=sflag, size = 0x4, scoped, tag = 'scoped memory for tpu_custom_call.1']
    #allocation5 [shape = 'u8[65536]{0}', space=vmem, size = 0x10000, scoped, tag = 'output window, operand 0, single buffered']
    %6 = vsyncpa [#allocation3], 0
    %7 = vsyncpa [#allocation4], 0
    // Predicated region
    $region2: #{tpu_custom_call.1} parent=1 // pred_check
      _
    $region3: #{tpu_custom_call.1} parent=1 // pred_check_branch
      %9 = sbr.rel (0) target = $region5
    $region4: #{tpu_custom_call.1} parent=1 // pred_region
      %s11 = ssub.s32 4096, 4096
      %12 = vsyncadd [#allocation3], %s11
      %s13 = sshll.u32 [#allocation2], 4
      %s14 = int_to_ptr.vmem [resolvable:$true] %s13
      %19 = dma.hbm_to_vmem [thread:$0]  %s0, 4096, %s14, [#allocation3], 128, 128, 8
    $region5: #{tpu_custom_call.1} parent=1 // pred_fallthru
      _
    // Predicated region
    $region6: #{tpu_custom_call.1} parent=1 // pred_check
      _
    $region7: #{tpu_custom_call.1} parent=1 // pred_check_branch
      %21 = sbr.rel (0) target = $region9
    $region8: #{tpu_custom_call.1} parent=1 // pred_region
      %22 = dma.done [#allocation3], 4096
    $region9: #{tpu_custom_call.1} parent=1 // pred_fallthru
      _
    %v23 = vld [vmem:[#allocation2] sm:$0xff]
    %v24 = vld [vmem:[#allocation2 + $0x8] sm:$0xff]
    %v25 = vld [vmem:[#allocation2 + $0x10] sm:$0xff]
    %v26 = vld [vmem:[#allocation2 + $0x18] sm:$0xff]
    %v27 = vunpack.c.0.s8 %v23
    %v28 = vunpack.c.1.s8 %v23
    %v29 = vunpack.c.2.s8 %v23
    %v30 = vunpack.c.3.s8 %v23
    %v31 = vunpack.c.0.s8 %v24
    %v32 = vunpack.c.1.s8 %v24
    %v33 = vunpack.c.2.s8 %v24
    %v34 = vunpack.c.3.s8 %v24
    %v35 = vunpack.c.0.s8 %v25
    %v36 = vunpack.c.1.s8 %v25
    %v37 = vunpack.c.2.s8 %v25
    %v38 = vunpack.c.3.s8 %v25
    %v39 = vunpack.c.0.s8 %v26
    %v40 = vunpack.c.1.s8 %v26
    %v41 = vunpack.c.2.s8 %v26
    %v42 = vunpack.c.3.s8 %v26
    %v43 = vmul.u32 %v27, 4294967168
    %v44 = vmul.u32 %v28, 4294967168
    %v45 = vmul.u32 %v29, 4294967168
    %v46 = vmul.u32 %v30, 4294967168
    %v47 = vmul.u32 %v31, 4294967168
    %v48 = vmul.u32 %v32, 4294967168
    %v49 = vmul.u32 %v33, 4294967168
    %v50 = vmul.u32 %v34, 4294967168
    %v51 = vmul.u32 %v35, 4294967168
    %v52 = vmul.u32 %v36, 4294967168
    %v53 = vmul.u32 %v37, 4294967168
    %v54 = vmul.u32 %v38, 4294967168
    %v55 = vmul.u32 %v39, 4294967168
    %v56 = vmul.u32 %v40, 4294967168
    %v57 = vmul.u32 %v41, 4294967168
    %v58 = vmul.u32 %v42, 4294967168
    %s59 = scalar_lea.vmem [#allocation2], 32
    %v60 = vld [vmem:[%s59] sm:$0xff]
    %v61 = vld [vmem:[%s59 + $0x8] sm:$0xff]
    %v62 = vld [vmem:[%s59 + $0x10] sm:$0xff]
    %v63 = vld [vmem:[%s59 + $0x18] sm:$0xff]
    %v64 = vunpack.c.0.s8 %v60
    %v65 = vunpack.c.1.s8 %v60
    %v66 = vunpack.c.2.s8 %v60
    %v67 = vunpack.c.3.s8 %v60
    %v68 = vunpack.c.0.s8 %v61
    %v69 = vunpack.c.1.s8 %v61
    %v70 = vunpack.c.2.s8 %v61
    %v71 = vunpack.c.3.s8 %v61
    %v72 = vunpack.c.0.s8 %v62
    %v73 = vunpack.c.1.s8 %v62
    %v74 = vunpack.c.2.s8 %v62
    %v75 = vunpack.c.3.s8 %v62
    %v76 = vunpack.c.0.s8 %v63
    %v77 = vunpack.c.1.s8 %v63
    %v78 = vunpack.c.2.s8 %v63
    %v79 = vunpack.c.3.s8 %v63
    %v80 = vmul.u32 %v64, 64
    %v81 = vmul.u32 %v65, 64
    %v82 = vmul.u32 %v66, 64
    %v83 = vmul.u32 %v67, 64
    %v84 = vmul.u32 %v68, 64
    %v85 = vmul.u32 %v69, 64
    %v86 = vmul.u32 %v70, 64
    %v87 = vmul.u32 %v71, 64
    %v88 = vmul.u32 %v72, 64
    %v89 = vmul.u32 %v73, 64
    %v90 = vmul.u32 %v74, 64
    %v91 = vmul.u32 %v75, 64
    %v92 = vmul.u32 %v76, 64
    %v93 = vmul.u32 %v77, 64
    %v94 = vmul.u32 %v78, 64
    %v95 = vmul.u32 %v79, 64
    %v96 = vadd.s32 %v43, %v80
    %v97 = vadd.s32 %v44, %v81
    %v98 = vadd.s32 %v45, %v82
    %v99 = vadd.s32 %v46, %v83
    %v100 = vadd.s32 %v47, %v84
    %v101 = vadd.s32 %v48, %v85
    %v102 = vadd.s32 %v49, %v86
    %v103 = vadd.s32 %v50, %v87
    %v104 = vadd.s32 %v51, %v88
    %v105 = vadd.s32 %v52, %v89
    %v106 = vadd.s32 %v53, %v90
    %v107 = vadd.s32 %v54, %v91
    %v108 = vadd.s32 %v55, %v92
    %v109 = vadd.s32 %v56, %v93
    %v110 = vadd.s32 %v57, %v94
    %v111 = vadd.s32 %v58, %v95
    %s112 = scalar_lea.vmem [#allocation2], 64
    %v113 = vld [vmem:[%s112] sm:$0xff]
    %v114 = vld [vmem:[%s112 + $0x8] sm:$0xff]
    %v115 = vld [vmem:[%s112 + $0x10] sm:$0xff]
    %v116 = vld [vmem:[%s112 + $0x18] sm:$0xff]
    %v117 = vunpack.c.0.s8 %v113
    %v118 = vunpack.c.1.s8 %v113
    %v119 = vunpack.c.2.s8 %v113
    %v120 = vunpack.c.3.s8 %v113
    %v121 = vunpack.c.0.s8 %v114
    %v122 = vunpack.c.1.s8 %v114
    %v123 = vunpack.c.2.s8 %v114
    %v124 = vunpack.c.3.s8 %v114
    %v125 = vunpack.c.0.s8 %v115
    %v126 = vunpack.c.1.s8 %v115
    %v127 = vunpack.c.2.s8 %v115
    %v128 = vunpack.c.3.s8 %v115
    %v129 = vunpack.c.0.s8 %v116
    %v130 = vunpack.c.1.s8 %v116
    %v131 = vunpack.c.2.s8 %v116
    %v132 = vunpack.c.3.s8 %v116
    %v133 = vmul.u32 %v117, 32
    %v134 = vmul.u32 %v118, 32
    %v135 = vmul.u32 %v119, 32
    %v136 = vmul.u32 %v120, 32
    %v137 = vmul.u32 %v121, 32
    %v138 = vmul.u32 %v122, 32
    %v139 = vmul.u32 %v123, 32
    %v140 = vmul.u32 %v124, 32
    %v141 = vmul.u32 %v125, 32
    %v142 = vmul.u32 %v126, 32
    %v143 = vmul.u32 %v127, 32
    %v144 = vmul.u32 %v128, 32
    %v145 = vmul.u32 %v129, 32
    %v146 = vmul.u32 %v130, 32
    %v147 = vmul.u32 %v131, 32
    %v148 = vmul.u32 %v132, 32
    %v149 = vadd.s32 %v96, %v133
    %v150 = vadd.s32 %v97, %v134
    %v151 = vadd.s32 %v98, %v135
    %v152 = vadd.s32 %v99, %v136
    %v153 = vadd.s32 %v100, %v137
    %v154 = vadd.s32 %v101, %v138
    %v155 = vadd.s32 %v102, %v139
    %v156 = vadd.s32 %v103, %v140
    %v157 = vadd.s32 %v104, %v141
    %v158 = vadd.s32 %v105, %v142
    %v159 = vadd.s32 %v106, %v143
    %v160 = vadd.s32 %v107, %v144
    %v161 = vadd.s32 %v108, %v145
    %v162 = vadd.s32 %v109, %v146
    %v163 = vadd.s32 %v110, %v147
    %v164 = vadd.s32 %v111, %v148
    %s165 = scalar_lea.vmem [#allocation2], 96
    %v166 = vld [vmem:[%s165] sm:$0xff]
    %v167 = vld [vmem:[%s165 + $0x8] sm:$0xff]
    %v168 = vld [vmem:[%s165 + $0x10] sm:$0xff]
    %v169 = vld [vmem:[%s165 + $0x18] sm:$0xff]
    %v170 = vunpack.c.0.s8 %v166
    %v171 = vunpack.c.1.s8 %v166
    %v172 = vunpack.c.2.s8 %v166
    %v173 = vunpack.c.3.s8 %v166
    %v174 = vunpack.c.0.s8 %v167
    %v175 = vunpack.c.1.s8 %v167
    %v176 = vunpack.c.2.s8 %v167
    %v177 = vunpack.c.3.s8 %v167
    %v178 = vunpack.c.0.s8 %v168
    %v179 = vunpack.c.1.s8 %v168
    %v180 = vunpack.c.2.s8 %v168
    %v181 = vunpack.c.3.s8 %v168
    %v182 = vunpack.c.0.s8 %v169
    %v183 = vunpack.c.1.s8 %v169
    %v184 = vunpack.c.2.s8 %v169
    %v185 = vunpack.c.3.s8 %v169
    %v186 = vmul.u32 %v170, 16
    %v187 = vmul.u32 %v171, 16
    %v188 = vmul.u32 %v172, 16
    %v189 = vmul.u32 %v173, 16
    %v190 = vmul.u32 %v174, 16
    %v191 = vmul.u32 %v175, 16
    %v192 = vmul.u32 %v176, 16
    %v193 = vmul.u32 %v177, 16
    %v194 = vmul.u32 %v178, 16
    %v195 = vmul.u32 %v179, 16
    %v196 = vmul.u32 %v180, 16
    %v197 = vmul.u32 %v181, 16
    %v198 = vmul.u32 %v182, 16
    %v199 = vmul.u32 %v183, 16
    %v200 = vmul.u32 %v184, 16
    %v201 = vmul.u32 %v185, 16
    %v202 = vadd.s32 %v149, %v186
    %v203 = vadd.s32 %v150, %v187
    %v204 = vadd.s32 %v151, %v188
    %v205 = vadd.s32 %v152, %v189
    %v206 = vadd.s32 %v153, %v190
    %v207 = vadd.s32 %v154, %v191
    %v208 = vadd.s32 %v155, %v192
    %v209 = vadd.s32 %v156, %v193
    %v210 = vadd.s32 %v157, %v194
    %v211 = vadd.s32 %v158, %v195
    %v212 = vadd.s32 %v159, %v196
    %v213 = vadd.s32 %v160, %v197
    %v214 = vadd.s32 %v161, %v198
    %v215 = vadd.s32 %v162, %v199
    %v216 = vadd.s32 %v163, %v200
    %v217 = vadd.s32 %v164, %v201
    %s218 = scalar_lea.vmem [#allocation2], 128
    %v219 = vld [vmem:[%s218] sm:$0xff]
    %v220 = vld [vmem:[%s218 + $0x8] sm:$0xff]
    %v221 = vld [vmem:[%s218 + $0x10] sm:$0xff]
    %v222 = vld [vmem:[%s218 + $0x18] sm:$0xff]
    %v223 = vunpack.c.0.s8 %v219
    %v224 = vunpack.c.1.s8 %v219
    %v225 = vunpack.c.2.s8 %v219
    %v226 = vunpack.c.3.s8 %v219
    %v227 = vunpack.c.0.s8 %v220
    %v228 = vunpack.c.1.s8 %v220
    %v229 = vunpack.c.2.s8 %v220
    %v230 = vunpack.c.3.s8 %v220
    %v231 = vunpack.c.0.s8 %v221
    %v232 = vunpack.c.1.s8 %v221
    %v233 = vunpack.c.2.s8 %v221
    %v234 = vunpack.c.3.s8 %v221
    %v235 = vunpack.c.0.s8 %v222
    %v236 = vunpack.c.1.s8 %v222
    %v237 = vunpack.c.2.s8 %v222
    %v238 = vunpack.c.3.s8 %v222
    %v239 = vmul.u32 %v223, 8
    %v240 = vmul.u32 %v224, 8
    %v241 = vmul.u32 %v225, 8
    %v242 = vmul.u32 %v226, 8
    %v243 = vmul.u32 %v227, 8
    %v244 = vmul.u32 %v228, 8
    %v245 = vmul.u32 %v229, 8
    %v246 = vmul.u32 %v230, 8
    %v247 = vmul.u32 %v231, 8
    %v248 = vmul.u32 %v232, 8
    %v249 = vmul.u32 %v233, 8
    %v250 = vmul.u32 %v234, 8
    %v251 = vmul.u32 %v235, 8
    %v252 = vmul.u32 %v236, 8
    %v253 = vmul.u32 %v237, 8
    %v254 = vmul.u32 %v238, 8
    %v255 = vadd.s32 %v202, %v239
    %v256 = vadd.s32 %v203, %v240
    %v257 = vadd.s32 %v204, %v241
    %v258 = vadd.s32 %v205, %v242
    %v259 = vadd.s32 %v206, %v243
    %v260 = vadd.s32 %v207, %v244
    %v261 = vadd.s32 %v208, %v245
    %v262 = vadd.s32 %v209, %v246
    %v263 = vadd.s32 %v210, %v247
    %v264 = vadd.s32 %v211, %v248
    %v265 = vadd.s32 %v212, %v249
    %v266 = vadd.s32 %v213, %v250
    %v267 = vadd.s32 %v214, %v251
    %v268 = vadd.s32 %v215, %v252
    %v269 = vadd.s32 %v216, %v253
    %v270 = vadd.s32 %v217, %v254
    %s271 = scalar_lea.vmem [#allocation2], 160
    %v272 = vld [vmem:[%s271] sm:$0xff]
    %v273 = vld [vmem:[%s271 + $0x8] sm:$0xff]
    %v274 = vld [vmem:[%s271 + $0x10] sm:$0xff]
    %v275 = vld [vmem:[%s271 + $0x18] sm:$0xff]
    %v276 = vunpack.c.0.s8 %v272
    %v277 = vunpack.c.1.s8 %v272
    %v278 = vunpack.c.2.s8 %v272
    %v279 = vunpack.c.3.s8 %v272
    %v280 = vunpack.c.0.s8 %v273
    %v281 = vunpack.c.1.s8 %v273
    %v282 = vunpack.c.2.s8 %v273
    %v283 = vunpack.c.3.s8 %v273
    %v284 = vunpack.c.0.s8 %v274
    %v285 = vunpack.c.1.s8 %v274
    %v286 = vunpack.c.2.s8 %v274
    %v287 = vunpack.c.3.s8 %v274
    %v288 = vunpack.c.0.s8 %v275
    %v289 = vunpack.c.1.s8 %v275
    %v290 = vunpack.c.2.s8 %v275
    %v291 = vunpack.c.3.s8 %v275
    %v292 = vmul.u32 %v276, 4
    %v293 = vmul.u32 %v277, 4
    %v294 = vmul.u32 %v278, 4
    %v295 = vmul.u32 %v279, 4
    %v296 = vmul.u32 %v280, 4
    %v297 = vmul.u32 %v281, 4
    %v298 = vmul.u32 %v282, 4
    %v299 = vmul.u32 %v283, 4
    %v300 = vmul.u32 %v284, 4
    %v301 = vmul.u32 %v285, 4
    %v302 = vmul.u32 %v286, 4
    %v303 = vmul.u32 %v287, 4
    %v304 = vmul.u32 %v288, 4
    %v305 = vmul.u32 %v289, 4
    %v306 = vmul.u32 %v290, 4
    %v307 = vmul.u32 %v291, 4
    %v308 = vadd.s32 %v255, %v292
    %v309 = vadd.s32 %v256, %v293
    %v310 = vadd.s32 %v257, %v294
    %v311 = vadd.s32 %v258, %v295
    %v312 = vadd.s32 %v259, %v296
    %v313 = vadd.s32 %v260, %v297
    %v314 = vadd.s32 %v261, %v298
    %v315 = vadd.s32 %v262, %v299
    %v316 = vadd.s32 %v263, %v300
    %v317 = vadd.s32 %v264, %v301
    %v318 = vadd.s32 %v265, %v302
    %v319 = vadd.s32 %v266, %v303
    %v320 = vadd.s32 %v267, %v304
    %v321 = vadd.s32 %v268, %v305
    %v322 = vadd.s32 %v269, %v306
    %v323 = vadd.s32 %v270, %v307
    %s324 = scalar_lea.vmem [#allocation2], 192
    %v325 = vld [vmem:[%s324] sm:$0xff]
    %v326 = vld [vmem:[%s324 + $0x8] sm:$0xff]
    %v327 = vld [vmem:[%s324 + $0x10] sm:$0xff]
    %v328 = vld [vmem:[%s324 + $0x18] sm:$0xff]
    %v329 = vunpack.c.0.s8 %v325
    %v330 = vunpack.c.1.s8 %v325
    %v331 = vunpack.c.2.s8 %v325
    %v332 = vunpack.c.3.s8 %v325
    %v333 = vunpack.c.0.s8 %v326
    %v334 = vunpack.c.1.s8 %v326
    %v335 = vunpack.c.2.s8 %v326
    %v336 = vunpack.c.3.s8 %v326
    %v337 = vunpack.c.0.s8 %v327
    %v338 = vunpack.c.1.s8 %v327
    %v339 = vunpack.c.2.s8 %v327
    %v340 = vunpack.c.3.s8 %v327
    %v341 = vunpack.c.0.s8 %v328
    %v342 = vunpack.c.1.s8 %v328
    %v343 = vunpack.c.2.s8 %v328
    %v344 = vunpack.c.3.s8 %v328
    %v345 = vmul.u32 %v329, 2
    %v346 = vmul.u32 %v330, 2
    %v347 = vmul.u32 %v331, 2
    %v348 = vmul.u32 %v332, 2
    %v349 = vmul.u32 %v333, 2
    %v350 = vmul.u32 %v334, 2
    %v351 = vmul.u32 %v335, 2
    %v352 = vmul.u32 %v336, 2
    %v353 = vmul.u32 %v337, 2
    %v354 = vmul.u32 %v338, 2
    %v355 = vmul.u32 %v339, 2
    %v356 = vmul.u32 %v340, 2
    %v357 = vmul.u32 %v341, 2
    %v358 = vmul.u32 %v342, 2
    %v359 = vmul.u32 %v343, 2
    %v360 = vmul.u32 %v344, 2
    %v361 = vadd.s32 %v308, %v345
    %v362 = vadd.s32 %v309, %v346
    %v363 = vadd.s32 %v310, %v347
    %v364 = vadd.s32 %v311, %v348
    %v365 = vadd.s32 %v312, %v349
    %v366 = vadd.s32 %v313, %v350
    %v367 = vadd.s32 %v314, %v351
    %v368 = vadd.s32 %v315, %v352
    %v369 = vadd.s32 %v316, %v353
    %v370 = vadd.s32 %v317, %v354
    %v371 = vadd.s32 %v318, %v355
    %v372 = vadd.s32 %v319, %v356
    %v373 = vadd.s32 %v320, %v357
    %v374 = vadd.s32 %v321, %v358
    %v375 = vadd.s32 %v322, %v359
    %v376 = vadd.s32 %v323, %v360
    %s377 = scalar_lea.vmem [#allocation2], 224
    %v378 = vld [vmem:[%s377] sm:$0xff]
    %v379 = vld [vmem:[%s377 + $0x8] sm:$0xff]
    %v380 = vld [vmem:[%s377 + $0x10] sm:$0xff]
    %v381 = vld [vmem:[%s377 + $0x18] sm:$0xff]
    %v382 = vunpack.c.0.s8 %v378
    %v383 = vunpack.c.1.s8 %v378
    %v384 = vunpack.c.2.s8 %v378
    %v385 = vunpack.c.3.s8 %v378
    %v386 = vunpack.c.0.s8 %v379
    %v387 = vunpack.c.1.s8 %v379
    %v388 = vunpack.c.2.s8 %v379
    %v389 = vunpack.c.3.s8 %v379
    %v390 = vunpack.c.0.s8 %v380
    %v391 = vunpack.c.1.s8 %v380
    %v392 = vunpack.c.2.s8 %v380
    %v393 = vunpack.c.3.s8 %v380
    %v394 = vunpack.c.0.s8 %v381
    %v395 = vunpack.c.1.s8 %v381
    %v396 = vunpack.c.2.s8 %v381
    %v397 = vunpack.c.3.s8 %v381
    %v398 = vadd.s32 %v361, %v382
    %v399 = vadd.s32 %v362, %v383
    %v400 = vadd.s32 %v363, %v384
    %v401 = vadd.s32 %v364, %v385
    %v402 = vadd.s32 %v365, %v386
    %v403 = vadd.s32 %v366, %v387
    %v404 = vadd.s32 %v367, %v388
    %v405 = vadd.s32 %v368, %v389
    %v406 = vadd.s32 %v369, %v390
    %v407 = vadd.s32 %v370, %v391
    %v408 = vadd.s32 %v371, %v392
    %v409 = vadd.s32 %v372, %v393
    %v410 = vadd.s32 %v373, %v394
    %v411 = vadd.s32 %v374, %v395
    %v412 = vadd.s32 %v375, %v396
    %v413 = vadd.s32 %v376, %v397
    %v414 = vcvt.s32.f32 %v398
    %v415 = vcvt.s32.f32 %v399
    %v416 = vcvt.s32.f32 %v400
    %v417 = vcvt.s32.f32 %v401
    %v418 = vcvt.s32.f32 %v402
    %v419 = vcvt.s32.f32 %v403
    %v420 = vcvt.s32.f32 %v404
    %v421 = vcvt.s32.f32 %v405
    %v422 = vcvt.s32.f32 %v406
    %v423 = vcvt.s32.f32 %v407
    %v424 = vcvt.s32.f32 %v408
    %v425 = vcvt.s32.f32 %v409
    %v426 = vcvt.s32.f32 %v410
    %v427 = vcvt.s32.f32 %v411
    %v428 = vcvt.s32.f32 %v412
    %v429 = vcvt.s32.f32 %v413
    %v430 = vmul.f32 %v414, 0.0125
    %v431 = vmul.f32 %v415, 0.0125
    %v432 = vmul.f32 %v416, 0.0125
    %v433 = vmul.f32 %v417, 0.0125
    %v434 = vmul.f32 %v418, 0.0125
    %v435 = vmul.f32 %v419, 0.0125
    %v436 = vmul.f32 %v420, 0.0125
    %v437 = vmul.f32 %v421, 0.0125
    %v438 = vmul.f32 %v422, 0.0125
    %v439 = vmul.f32 %v423, 0.0125
    %v440 = vmul.f32 %v424, 0.0125
    %v441 = vmul.f32 %v425, 0.0125
    %v442 = vmul.f32 %v426, 0.0125
    %v443 = vmul.f32 %v427, 0.0125
    %v444 = vmul.f32 %v428, 0.0125
    %v445 = vmul.f32 %v429, 0.0125
    %446 = vst [vmem:[#allocation5] sm:$0xff] %v430
    %447 = vst [vmem:[#allocation5 + $0x8] sm:$0xff] %v431
    %448 = vst [vmem:[#allocation5 + $0x10] sm:$0xff] %v432
    %449 = vst [vmem:[#allocation5 + $0x18] sm:$0xff] %v433
    %450 = vst [vmem:[#allocation5 + $0x20] sm:$0xff] %v434
    %451 = vst [vmem:[#allocation5 + $0x28] sm:$0xff] %v435
    %452 = vst [vmem:[#allocation5 + $0x30] sm:$0xff] %v436
    %453 = vst [vmem:[#allocation5 + $0x38] sm:$0xff] %v437
    %454 = vst [vmem:[#allocation5 + $0x40] sm:$0xff] %v438
    %455 = vst [vmem:[#allocation5 + $0x48] sm:$0xff] %v439
    %456 = vst [vmem:[#allocation5 + $0x50] sm:$0xff] %v440
    %457 = vst [vmem:[#allocation5 + $0x58] sm:$0xff] %v441
    %458 = vst [vmem:[#allocation5 + $0x60] sm:$0xff] %v442
    %459 = vst [vmem:[#allocation5 + $0x68] sm:$0xff] %v443
    %460 = vst [vmem:[#allocation5 + $0x70] sm:$0xff] %v444
    %461 = vst [vmem:[#allocation5 + $0x78] sm:$0xff] %v445
    // Predicated region
    $region10: #{tpu_custom_call.1} parent=1 // pred_check
      _
    $region11: #{tpu_custom_call.1} parent=1 // pred_check_branch
      %463 = sbr.rel (0) target = $region13
    $region12: #{tpu_custom_call.1} parent=1 // pred_region
      %s465 = ssub.s32 2048, 2048
      %466 = vsyncadd [#allocation4], %s465
      %s467 = sshll.u32 [#allocation5], 4
      %s468 = int_to_ptr.vmem [resolvable:$true] %s467
      %473 = dma.vmem_to_hbm [thread:$0]  %s468, 2048, %s1, [#allocation4], 128, 128, 8
    $region13: #{tpu_custom_call.1} parent=1 // pred_fallthru
      _
    // Predicated region
    $region14: #{tpu_custom_call.1} parent=1 // pred_check
      _
    $region15: #{tpu_custom_call.1} parent=1 // pred_check_branch
      %475 = sbr.rel (0) target = $region17
    $region16: #{tpu_custom_call.1} parent=1 // pred_region
      %476 = dma.done [#allocation4], 2048
    $region17: #{tpu_custom_call.1} parent=1 // pred_fallthru
      _
    %477 = vsyncpa [#allocation3], 1
    %478 = vsyncpa [#allocation4], 1

</llo_original>
